<compile_context>
chip_gen: v6e
topology: v6e:2x2x1
jax: 0.10.0
libtpu: 0.0.40
codegen_flags: <defaults>
</compile_context>

<pallas_src>
import functools

import jax
import jax.numpy as jnp
from jax import lax
from jax.experimental import pallas as pl
from jax.experimental.pallas import tpu as pltpu

KERNEL_SIZE = 7
PAD = (KERNEL_SIZE - 1) // 2


def _sta_kernel(x_ref, w1t_ref, w2t_ref, wc_ref, out_ref, *, inv_l, ew_dtype):
    # x_ref: (Bt, C, Lp) VMEM; w1t_ref: (C, H) f32; w2t_ref: (H, C) f32;
    # wc_ref: (2*KERNEL_SIZE,) SMEM conv taps; out_ref: (Bt, C, Lp) VMEM.
    # NOTE: when B % Bt != 0 the padded rows of the last block hold
    # unspecified data -- rows are fully independent and the store is clipped
    # to the true B, so this is benign (do not "fix" NaNs seen in those rows).
    Bt, C, Lp = x_ref.shape

    x = x_ref[...].astype(ew_dtype)                               # (Bt, C, Lp)

    # ---------------- Channel attention ----------------
    # AdaptiveAvgPool1d(1): mean over the TRUE L (padded lanes are zero).
    y = jnp.sum(x, axis=2, dtype=jnp.float32) * inv_l             # (Bt, C) f32
    h = jnp.dot(y, w1t_ref[...], preferred_element_type=jnp.float32)   # (Bt, H)
    h = jnp.maximum(h, 0.0)                                       # ReLU
    z = jnp.dot(h, w2t_ref[...], preferred_element_type=jnp.float32)   # (Bt, C)
    z = jax.nn.sigmoid(z)
    x1 = x * z.astype(ew_dtype)[:, :, None]                       # (Bt, C, Lp)

    # ---------------- Spatial attention ----------------
    avg = jnp.sum(x1, axis=1, dtype=jnp.float32) * (1.0 / C)      # (Bt, Lp) f32
    mx = jnp.max(x1, axis=1).astype(jnp.float32)                  # (Bt, Lp) f32
    st = jnp.concatenate([avg, mx], axis=0)                       # (2Bt, Lp)

    # Hoist conv-weight scalar reads + splats out of the tap loop: per tap k a
    # (2*Bt, 1) column [wc_avg[k]]*Bt ++ [wc_max[k]]*Bt applied to the stack.
    w_cols = []
    for k in range(KERNEL_SIZE):
        w_cols.append(jnp.concatenate(
            [jnp.full((Bt, 1), wc_ref[k], jnp.float32),
             jnp.full((Bt, 1), wc_ref[KERNEL_SIZE + k], jnp.float32)], axis=0))

    # Conv1d(2 -> 1, kernel_size=7, padding=3, bias=False): zero-padded
    # cross-correlation (torch semantics): out[l] += w[k] * in[l + k - PAD].
    lane = lax.broadcasted_iota(jnp.int32, (1, Lp), 1)
    acc = jnp.zeros((2 * Bt, Lp), jnp.float32)
    for k in range(KERNEL_SIZE):
        s = k - PAD
        if s == 0:
            sh = st                                               # center tap
        else:
            sh = pltpu.roll(st, shift=(-s) % Lp, axis=1)
            valid = jnp.logical_and(lane + s >= 0, lane + s < Lp)
            sh = jnp.where(valid, sh, 0.0)
        acc = acc + w_cols[k] * sh
    conv = acc[:Bt, :] + acc[Bt:, :]                              # avg-part + max-part
    att = jax.nn.sigmoid(conv)                                    # (Bt, Lp) f32

    out_ref[...] = (x1 * att.astype(ew_dtype)[:, None, :]).astype(out_ref.dtype)


def _vmem_capacity_bytes():
    try:
        return int(pltpu.get_tpu_info().vmem_capacity_bytes)
    except Exception:
        return 64 * 1024 * 1024            # conservative default (v7x per-TC VMEM)


def _choose_block_b(B, C, Lp, in_itemsize, ew_itemsize, vmem_cap):
    """Batch-tile size.  No divisibility fallback: a ragged last block is
    handled by the cdiv grid (one masked tail is cheaper than tiny tiles)."""
    big_vmem = vmem_cap >= 96 * 1024 * 1024           # 128 MiB (v5e/v6e) vs 64 MiB (v7x)
    target = (6 if big_vmem else 3) * 1024 * 1024     # bytes of x per tile
    per_b_in = max(1, C * Lp * in_itemsize)
    bt = max(1, min(B, target // per_b_in))
    # Working set per row: 2x in + 2x out double buffers + ~4 live elementwise temps.
    per_b_ws = C * Lp * (4 * in_itemsize + 4 * ew_itemsize)
    bt = max(1, min(bt, (int(vmem_cap * 0.75) // 2) // max(1, per_b_ws)))
    # >= 4 grid steps when B allows: >= 2 per TensorCore on 2-TC chips (v7x),
    # and enough steps to overlap DMA with compute on 1-TC chips.
    if B >= 4:
        bt = min(bt, B // 4)
    return max(1, bt)


def spatio_temporal_attention(x, w1, w2, wconv, *, block_b=None):
    """x: (B, C, L); w1: (C//r, C) [fc1.weight]; w2: (C, C//r) [fc2.weight];
    wconv: (2, KERNEL_SIZE) [conv.weight[0]]."""
    B, C, L = x.shape
    H = w1.shape[0]

    # Elementwise-pass dtype: keep bf16 inputs in bf16 (halves VMEM/HBM/VALU
    # traffic on v6e/v7x); pools and FC matmuls still accumulate in f32.
    # TODO(synk): gate the bf16 elementwise path off on v5e (no bf16 VPU/EUP).
    ew_dtype = jnp.bfloat16 if x.dtype == jnp.bfloat16 else jnp.float32

    # Lane-dense stores: zero-pad L up to a multiple of 128.  Correctness is
    # preserved because the mean over L divides by the true L and the padded
    # x columns are zero (so their avg/max/conv contributions are zero, same
    # as torch's zero padding).
    Lp = max(128, ((L + 127) // 128) * 128)
    x_in = jnp.pad(x, ((0, 0), (0, 0), (0, Lp - L))) if Lp != L else x

    vmem_cap = _vmem_capacity_bytes()
    vmem_limit = max(32 * 1024 * 1024, min(int(vmem_cap * 0.75), 112 * 1024 * 1024))
    if block_b is None:
        block_b = _choose_block_b(B, C, Lp, x.dtype.itemsize,
                                  jnp.dtype(ew_dtype).itemsize, vmem_cap)
    block_b = max(1, min(int(block_b), B))
    grid_b = pl.cdiv(B, block_b)

    w1t = jnp.asarray(w1, jnp.float32).T                 # (C, H): y @ w1t == y @ fc1.weight.T
    w2t = jnp.asarray(w2, jnp.float32).T                 # (H, C)
    wc = jnp.asarray(wconv, jnp.float32).reshape(-1)     # (2*KERNEL_SIZE,) flat for SMEM

    kernel = functools.partial(_sta_kernel, inv_l=1.0 / L, ew_dtype=ew_dtype)

    out = pl.pallas_call(
        kernel,
        out_shape=jax.ShapeDtypeStruct((B, C, Lp), x.dtype),
        grid_spec=pltpu.PrefetchScalarGridSpec(
            num_scalar_prefetch=0,
            grid=(grid_b,),
            in_specs=[
                pl.BlockSpec((block_b, C, Lp), lambda b: (b, 0, 0)),   # x batch tile
                pl.BlockSpec((C, H), lambda b: (0, 0)),                # fc1.weight^T
                pl.BlockSpec((H, C), lambda b: (0, 0)),                # fc2.weight^T
                pl.BlockSpec(memory_space=pltpu.MemorySpace.SMEM),     # conv taps (scalars)
            ],
            out_specs=pl.BlockSpec((block_b, C, Lp), lambda b: (b, 0, 0)),
        ),
        compiler_params=pltpu.CompilerParams(
            dimension_semantics=("parallel",),        # shard batch tiles across TCs (v7x)
            vmem_limit_bytes=vmem_limit,              # per-generation VMEM budget
        ),
    )(x_in, w1t, w2t, wc)

    return out[..., :L] if Lp != L else out


def _reference(x, w1, w2, wc):
    """Pure-JAX reference matching the PyTorch forward."""
    B, C, L = x.shape
    y = jnp.mean(x, axis=2)                                   # (B, C)
    h = jax.nn.relu(jnp.einsum("bc,hc->bh", y, w1))           # Linear(C, C//r, bias=False)
    z = jax.nn.sigmoid(jnp.einsum("bh,ch->bc", h, w2))        # Linear(C//r, C, bias=False)
    x1 = x * z[:, :, None]
    avg = jnp.mean(x1, axis=1)                                # (B, L)
    mx = jnp.max(x1, axis=1)                                  # (B, L)
    avg_p = jnp.pad(avg, ((0, 0), (PAD, PAD)))
    mx_p = jnp.pad(mx, ((0, 0), (PAD, PAD)))
    out = jnp.zeros((B, L), jnp.float32)
    for k in range(KERNEL_SIZE):
        out = out + wc[0, k] * avg_p[:, k:k + L] + wc[1, k] * mx_p[:, k:k + L]
    att = jax.nn.sigmoid(out)[:, None, :]
    return x1 * att


if __name__ == "__main__":
    key = jax.random.PRNGKey(0)

    # Case 1: "nice" shapes (lane-dense L, C % 8 == 0).
    B, C, L = 8, 32, 128
    reduction = 16
    H = C // reduction
    kx, k1, k2, k3, key = jax.random.split(key, 5)
    x = jax.random.normal(kx, (B, C, L), jnp.float32)
    w1 = 0.1 * jax.random.normal(k1, (H, C), jnp.float32)               # Linear(C, C//r).weight
    w2 = 0.1 * jax.random.normal(k2, (C, H), jnp.float32)               # Linear(C//r, C).weight
    wconv = 0.1 * jax.random.normal(k3, (2, KERNEL_SIZE), jnp.float32)  # Conv1d(2,1,7).weight[0]

    out = jax.block_until_ready(spatio_temporal_attention(x, w1, w2, wconv))
    ref = _reference(x, w1, w2, wconv)
    assert out.shape == (B, C, L)
    err = float(jnp.max(jnp.abs(out - ref)))
    assert err < 1e-4, err

    # Case 2: awkward shapes -- exercises L padding (100 -> 128) and a ragged
    # last batch block (B=5 with block_b=2).
    B2, C2, L2, r2 = 5, 20, 100, 4
    H2 = C2 // r2
    kx, k1, k2, k3, key = jax.random.split(key, 5)
    x2 = jax.random.normal(kx, (B2, C2, L2), jnp.float32)
    w1b = 0.1 * jax.random.normal(k1, (H2, C2), jnp.float32)
    w2b = 0.1 * jax.random.normal(k2, (C2, H2), jnp.float32)
    wcb = 0.1 * jax.random.normal(k3, (2, KERNEL_SIZE), jnp.float32)

    out2 = jax.block_until_ready(
        spatio_temporal_attention(x2, w1b, w2b, wcb, block_b=2))
    ref2 = _reference(x2, w1b, w2b, wcb)
    assert out2.shape == (B2, C2, L2)
    err2 = float(jnp.max(jnp.abs(out2 - ref2)))
    assert err2 < 1e-4, err2

    print("KERNEL_OK")
</pallas_src>

<mosaic_0001>
module attributes {stable_mosaic.version = 11 : i64} {
  func.func @_sta_kernel(%arg0: i32, %arg1: memref<2x32x128xf32, #tpu.memory_space<vmem>>, %arg2: memref<32x2xf32, #tpu.memory_space<vmem>>, %arg3: memref<2x32xf32, #tpu.memory_space<vmem>>, %arg4: memref<14xf32, #tpu.memory_space<smem>>, %arg5: memref<2x32x128xf32, #tpu.memory_space<vmem>>) attributes {dimension_semantics = [#tpu.dimension_semantics<parallel>], iteration_bounds = array<i64: 4>, scalar_prefetch = 0 : i64, scratch_operands = 0 : i64, tpu.core_type = #tpu.core_type<tc>, window_params = [{transform_indices = @transform_0, window_bounds = array<i64: 2, 32, 128>}, {pipeline_mode = #tpu.pipeline_mode<synchronous>, transform_indices = @transform_1, window_bounds = array<i64: 32, 2>}, {pipeline_mode = #tpu.pipeline_mode<synchronous>, transform_indices = @transform_2, window_bounds = array<i64: 2, 32>}, {transform_indices = @transform_3, window_bounds = array<i64: 14>}, {transform_indices = @transform_4, window_bounds = array<i64: 2, 32, 128>}]} {
    %c0 = arith.constant 0 : index
    %c0_0 = arith.constant 0 : index
    %c0_1 = arith.constant 0 : index
    %0 = vector.load %arg1[%c0, %c0_0, %c0_1] : memref<2x32x128xf32, #tpu.memory_space<vmem>>, vector<2x32x128xf32>
    %cst = arith.constant dense<0.000000e+00> : vector<2x32xf32>
    %1 = vector.multi_reduction <add>, %0, %cst [2] : vector<2x32x128xf32> to vector<2x32xf32>
    %cst_2 = arith.constant 7.812500e-03 : f32
    %2 = vector.broadcast %cst_2 : f32 to vector<2x32xf32>
    %3 = arith.mulf %1, %2 : vector<2x32xf32>
    %c0_3 = arith.constant 0 : index
    %c0_4 = arith.constant 0 : index
    %4 = vector.load %arg2[%c0_3, %c0_4] : memref<32x2xf32, #tpu.memory_space<vmem>>, vector<32x2xf32>
    %cst_5 = arith.constant dense<0.000000e+00> : vector<2x2xf32>
    %5 = tpu.matmul %3, %4, %cst_5 {dimension_numbers = #tpu.dot_dimension_numbers<[1], [0], [0], [1], [0, 0, 1, 1], [], []>} : vector<2x32xf32>, vector<32x2xf32>, vector<2x2xf32> -> vector<2x2xf32>
    %cst_6 = arith.constant 0.000000e+00 : f32
    %6 = vector.broadcast %cst_6 : f32 to vector<2x2xf32>
    %7 = arith.maximumf %5, %6 : vector<2x2xf32>
    %c0_7 = arith.constant 0 : index
    %c0_8 = arith.constant 0 : index
    %8 = vector.load %arg3[%c0_7, %c0_8] : memref<2x32xf32, #tpu.memory_space<vmem>>, vector<2x32xf32>
    %cst_9 = arith.constant dense<0.000000e+00> : vector<2x32xf32>
    %9 = tpu.matmul %7, %8, %cst_9 {dimension_numbers = #tpu.dot_dimension_numbers<[1], [0], [0], [1], [0, 0, 1, 1], [], []>} : vector<2x2xf32>, vector<2x32xf32>, vector<2x32xf32> -> vector<2x32xf32>
    %10 = arith.negf %9 : vector<2x32xf32>
    %11 = math.exp %10 : vector<2x32xf32>
    %cst_10 = arith.constant 1.000000e+00 : f32
    %12 = vector.broadcast %cst_10 : f32 to vector<2x32xf32>
    %13 = arith.addf %12, %11 : vector<2x32xf32>
    %14 = arith.divf %12, %13 : vector<2x32xf32>
    %15 = vector.shape_cast %14 : vector<2x32xf32> to vector<2x32x1xf32>
    %16 = vector.broadcast %15 : vector<2x32x1xf32> to vector<2x32x128xf32>
    %17 = arith.mulf %0, %16 : vector<2x32x128xf32>
    %cst_11 = arith.constant dense<0.000000e+00> : vector<2x128xf32>
    %18 = vector.multi_reduction <add>, %17, %cst_11 [1] : vector<2x32x128xf32> to vector<2x128xf32>
    %cst_12 = arith.constant 3.125000e-02 : f32
    %19 = vector.broadcast %cst_12 : f32 to vector<2x128xf32>
    %20 = arith.mulf %18, %19 : vector<2x128xf32>
    %cst_13 = arith.constant dense<0xFF800000> : vector<2x128xf32>
    %21 = vector.multi_reduction <maximumf>, %17, %cst_13 [1] : vector<2x32x128xf32> to vector<2x128xf32>
    %22 = tpu.concatenate %20, %21 in 0 : vector<2x128xf32>, vector<2x128xf32> -> vector<4x128xf32>
    %c0_14 = arith.constant 0 : index
    %23 = memref.load %arg4[%c0_14] : memref<14xf32, #tpu.memory_space<smem>>
    %24 = vector.broadcast %23 : f32 to vector<2x1xf32>
    %c7 = arith.constant 7 : index
    %25 = memref.load %arg4[%c7] : memref<14xf32, #tpu.memory_space<smem>>
    %26 = vector.broadcast %25 : f32 to vector<2x1xf32>
    %27 = tpu.concatenate %24, %26 in 0 : vector<2x1xf32>, vector<2x1xf32> -> vector<4x1xf32>
    %c1 = arith.constant 1 : index
    %28 = memref.load %arg4[%c1] : memref<14xf32, #tpu.memory_space<smem>>
    %29 = vector.broadcast %28 : f32 to vector<2x1xf32>
    %c8 = arith.constant 8 : index
    %30 = memref.load %arg4[%c8] : memref<14xf32, #tpu.memory_space<smem>>
    %31 = vector.broadcast %30 : f32 to vector<2x1xf32>
    %32 = tpu.concatenate %29, %31 in 0 : vector<2x1xf32>, vector<2x1xf32> -> vector<4x1xf32>
    %c2 = arith.constant 2 : index
    %33 = memref.load %arg4[%c2] : memref<14xf32, #tpu.memory_space<smem>>
    %34 = vector.broadcast %33 : f32 to vector<2x1xf32>
    %c9 = arith.constant 9 : index
    %35 = memref.load %arg4[%c9] : memref<14xf32, #tpu.memory_space<smem>>
    %36 = vector.broadcast %35 : f32 to vector<2x1xf32>
    %37 = tpu.concatenate %34, %36 in 0 : vector<2x1xf32>, vector<2x1xf32> -> vector<4x1xf32>
    %c3 = arith.constant 3 : index
    %38 = memref.load %arg4[%c3] : memref<14xf32, #tpu.memory_space<smem>>
    %39 = vector.broadcast %38 : f32 to vector<2x1xf32>
    %c10 = arith.constant 10 : index
    %40 = memref.load %arg4[%c10] : memref<14xf32, #tpu.memory_space<smem>>
    %41 = vector.broadcast %40 : f32 to vector<2x1xf32>
    %42 = tpu.concatenate %39, %41 in 0 : vector<2x1xf32>, vector<2x1xf32> -> vector<4x1xf32>
    %c4 = arith.constant 4 : index
    %43 = memref.load %arg4[%c4] : memref<14xf32, #tpu.memory_space<smem>>
    %44 = vector.broadcast %43 : f32 to vector<2x1xf32>
    %c11 = arith.constant 11 : index
    %45 = memref.load %arg4[%c11] : memref<14xf32, #tpu.memory_space<smem>>
    %46 = vector.broadcast %45 : f32 to vector<2x1xf32>
    %47 = tpu.concatenate %44, %46 in 0 : vector<2x1xf32>, vector<2x1xf32> -> vector<4x1xf32>
    %c5 = arith.constant 5 : index
    %48 = memref.load %arg4[%c5] : memref<14xf32, #tpu.memory_space<smem>>
    %49 = vector.broadcast %48 : f32 to vector<2x1xf32>
    %c12 = arith.constant 12 : index
    %50 = memref.load %arg4[%c12] : memref<14xf32, #tpu.memory_space<smem>>
    %51 = vector.broadcast %50 : f32 to vector<2x1xf32>
    %52 = tpu.concatenate %49, %51 in 0 : vector<2x1xf32>, vector<2x1xf32> -> vector<4x1xf32>
    %c6 = arith.constant 6 : index
    %53 = memref.load %arg4[%c6] : memref<14xf32, #tpu.memory_space<smem>>
    %54 = vector.broadcast %53 : f32 to vector<2x1xf32>
    %c13 = arith.constant 13 : index
    %55 = memref.load %arg4[%c13] : memref<14xf32, #tpu.memory_space<smem>>
    %56 = vector.broadcast %55 : f32 to vector<2x1xf32>
    %57 = tpu.concatenate %54, %56 in 0 : vector<2x1xf32>, vector<2x1xf32> -> vector<4x1xf32>
    %58 = tpu.iota {dimensions = array<i32: 1>} : vector<1x128xi32>
    %cst_15 = arith.constant 0.000000e+00 : f32
    %59 = vector.broadcast %cst_15 : f32 to vector<4x128xf32>
    %c3_i32 = arith.constant 3 : i32
    %60 = tpu.dynamic_rotate %22 by %c3_i32 dim 1 : vector<4x128xf32>, i32 -> vector<4x128xf32>
    %c-3_i32 = arith.constant -3 : i32
    %61 = vector.broadcast %c-3_i32 : i32 to vector<1x128xi32>
    %62 = arith.addi %58, %61 : vector<1x128xi32>
    %c0_i32 = arith.constant 0 : i32
    %63 = vector.broadcast %c0_i32 : i32 to vector<1x128xi32>
    %64 = arith.cmpi sge, %62, %63 : vector<1x128xi32>
    %c-3_i32_16 = arith.constant -3 : i32
    %65 = vector.broadcast %c-3_i32_16 : i32 to vector<1x128xi32>
    %66 = arith.addi %58, %65 : vector<1x128xi32>
    %c128_i32 = arith.constant 128 : i32
    %67 = vector.broadcast %c128_i32 : i32 to vector<1x128xi32>
    %68 = arith.cmpi slt, %66, %67 : vector<1x128xi32>
    %69 = arith.andi %64, %68 : vector<1x128xi1>
    %cst_17 = arith.constant 0.000000e+00 : f32
    %70 = vector.shape_cast %69 : vector<1x128xi1> to vector<1x128xi1>
    %71 = vector.broadcast %70 : vector<1x128xi1> to vector<4x128xi1>
    %72 = vector.broadcast %cst_17 : f32 to vector<4x128xf32>
    %73 = arith.select %71, %60, %72 : vector<4x128xi1>, vector<4x128xf32>
    %74 = vector.broadcast %27 : vector<4x1xf32> to vector<4x128xf32>
    %75 = arith.mulf %74, %73 : vector<4x128xf32>
    %76 = arith.addf %59, %75 : vector<4x128xf32>
    %c2_i32 = arith.constant 2 : i32
    %77 = tpu.dynamic_rotate %22 by %c2_i32 dim 1 : vector<4x128xf32>, i32 -> vector<4x128xf32>
    %c-2_i32 = arith.constant -2 : i32
    %78 = vector.broadcast %c-2_i32 : i32 to vector<1x128xi32>
    %79 = arith.addi %58, %78 : vector<1x128xi32>
    %c0_i32_18 = arith.constant 0 : i32
    %80 = vector.broadcast %c0_i32_18 : i32 to vector<1x128xi32>
    %81 = arith.cmpi sge, %79, %80 : vector<1x128xi32>
    %c-2_i32_19 = arith.constant -2 : i32
    %82 = vector.broadcast %c-2_i32_19 : i32 to vector<1x128xi32>
    %83 = arith.addi %58, %82 : vector<1x128xi32>
    %c128_i32_20 = arith.constant 128 : i32
    %84 = vector.broadcast %c128_i32_20 : i32 to vector<1x128xi32>
    %85 = arith.cmpi slt, %83, %84 : vector<1x128xi32>
    %86 = arith.andi %81, %85 : vector<1x128xi1>
    %cst_21 = arith.constant 0.000000e+00 : f32
    %87 = vector.shape_cast %86 : vector<1x128xi1> to vector<1x128xi1>
    %88 = vector.broadcast %87 : vector<1x128xi1> to vector<4x128xi1>
    %89 = vector.broadcast %cst_21 : f32 to vector<4x128xf32>
    %90 = arith.select %88, %77, %89 : vector<4x128xi1>, vector<4x128xf32>
    %91 = vector.broadcast %32 : vector<4x1xf32> to vector<4x128xf32>
    %92 = arith.mulf %91, %90 : vector<4x128xf32>
    %93 = arith.addf %76, %92 : vector<4x128xf32>
    %c1_i32 = arith.constant 1 : i32
    %94 = tpu.dynamic_rotate %22 by %c1_i32 dim 1 : vector<4x128xf32>, i32 -> vector<4x128xf32>
    %c-1_i32 = arith.constant -1 : i32
    %95 = vector.broadcast %c-1_i32 : i32 to vector<1x128xi32>
    %96 = arith.addi %58, %95 : vector<1x128xi32>
    %c0_i32_22 = arith.constant 0 : i32
    %97 = vector.broadcast %c0_i32_22 : i32 to vector<1x128xi32>
    %98 = arith.cmpi sge, %96, %97 : vector<1x128xi32>
    %c-1_i32_23 = arith.constant -1 : i32
    %99 = vector.broadcast %c-1_i32_23 : i32 to vector<1x128xi32>
    %100 = arith.addi %58, %99 : vector<1x128xi32>
    %c128_i32_24 = arith.constant 128 : i32
    %101 = vector.broadcast %c128_i32_24 : i32 to vector<1x128xi32>
    %102 = arith.cmpi slt, %100, %101 : vector<1x128xi32>
    %103 = arith.andi %98, %102 : vector<1x128xi1>
    %cst_25 = arith.constant 0.000000e+00 : f32
    %104 = vector.shape_cast %103 : vector<1x128xi1> to vector<1x128xi1>
    %105 = vector.broadcast %104 : vector<1x128xi1> to vector<4x128xi1>
    %106 = vector.broadcast %cst_25 : f32 to vector<4x128xf32>
    %107 = arith.select %105, %94, %106 : vector<4x128xi1>, vector<4x128xf32>
    %108 = vector.broadcast %37 : vector<4x1xf32> to vector<4x128xf32>
    %109 = arith.mulf %108, %107 : vector<4x128xf32>
    %110 = arith.addf %93, %109 : vector<4x128xf32>
    %111 = vector.broadcast %42 : vector<4x1xf32> to vector<4x128xf32>
    %112 = arith.mulf %111, %22 : vector<4x128xf32>
    %113 = arith.addf %110, %112 : vector<4x128xf32>
    %c127_i32 = arith.constant 127 : i32
    %114 = tpu.dynamic_rotate %22 by %c127_i32 dim 1 : vector<4x128xf32>, i32 -> vector<4x128xf32>
    %c1_i32_26 = arith.constant 1 : i32
    %115 = vector.broadcast %c1_i32_26 : i32 to vector<1x128xi32>
    %116 = arith.addi %58, %115 : vector<1x128xi32>
    %c0_i32_27 = arith.constant 0 : i32
    %117 = vector.broadcast %c0_i32_27 : i32 to vector<1x128xi32>
    %118 = arith.cmpi sge, %116, %117 : vector<1x128xi32>
    %c1_i32_28 = arith.constant 1 : i32
    %119 = vector.broadcast %c1_i32_28 : i32 to vector<1x128xi32>
    %120 = arith.addi %58, %119 : vector<1x128xi32>
    %c128_i32_29 = arith.constant 128 : i32
    %121 = vector.broadcast %c128_i32_29 : i32 to vector<1x128xi32>
    %122 = arith.cmpi slt, %120, %121 : vector<1x128xi32>
    %123 = arith.andi %118, %122 : vector<1x128xi1>
    %cst_30 = arith.constant 0.000000e+00 : f32
    %124 = vector.shape_cast %123 : vector<1x128xi1> to vector<1x128xi1>
    %125 = vector.broadcast %124 : vector<1x128xi1> to vector<4x128xi1>
    %126 = vector.broadcast %cst_30 : f32 to vector<4x128xf32>
    %127 = arith.select %125, %114, %126 : vector<4x128xi1>, vector<4x128xf32>
    %128 = vector.broadcast %47 : vector<4x1xf32> to vector<4x128xf32>
    %129 = arith.mulf %128, %127 : vector<4x128xf32>
    %130 = arith.addf %113, %129 : vector<4x128xf32>
    %c126_i32 = arith.constant 126 : i32
    %131 = tpu.dynamic_rotate %22 by %c126_i32 dim 1 : vector<4x128xf32>, i32 -> vector<4x128xf32>
    %c2_i32_31 = arith.constant 2 : i32
    %132 = vector.broadcast %c2_i32_31 : i32 to vector<1x128xi32>
    %133 = arith.addi %58, %132 : vector<1x128xi32>
    %c0_i32_32 = arith.constant 0 : i32
    %134 = vector.broadcast %c0_i32_32 : i32 to vector<1x128xi32>
    %135 = arith.cmpi sge, %133, %134 : vector<1x128xi32>
    %c2_i32_33 = arith.constant 2 : i32
    %136 = vector.broadcast %c2_i32_33 : i32 to vector<1x128xi32>
    %137 = arith.addi %58, %136 : vector<1x128xi32>
    %c128_i32_34 = arith.constant 128 : i32
    %138 = vector.broadcast %c128_i32_34 : i32 to vector<1x128xi32>
    %139 = arith.cmpi slt, %137, %138 : vector<1x128xi32>
    %140 = arith.andi %135, %139 : vector<1x128xi1>
    %cst_35 = arith.constant 0.000000e+00 : f32
    %141 = vector.shape_cast %140 : vector<1x128xi1> to vector<1x128xi1>
    %142 = vector.broadcast %141 : vector<1x128xi1> to vector<4x128xi1>
    %143 = vector.broadcast %cst_35 : f32 to vector<4x128xf32>
    %144 = arith.select %142, %131, %143 : vector<4x128xi1>, vector<4x128xf32>
    %145 = vector.broadcast %52 : vector<4x1xf32> to vector<4x128xf32>
    %146 = arith.mulf %145, %144 : vector<4x128xf32>
    %147 = arith.addf %130, %146 : vector<4x128xf32>
    %c125_i32 = arith.constant 125 : i32
    %148 = tpu.dynamic_rotate %22 by %c125_i32 dim 1 : vector<4x128xf32>, i32 -> vector<4x128xf32>
    %c3_i32_36 = arith.constant 3 : i32
    %149 = vector.broadcast %c3_i32_36 : i32 to vector<1x128xi32>
    %150 = arith.addi %58, %149 : vector<1x128xi32>
    %c0_i32_37 = arith.constant 0 : i32
    %151 = vector.broadcast %c0_i32_37 : i32 to vector<1x128xi32>
    %152 = arith.cmpi sge, %150, %151 : vector<1x128xi32>
    %c3_i32_38 = arith.constant 3 : i32
    %153 = vector.broadcast %c3_i32_38 : i32 to vector<1x128xi32>
    %154 = arith.addi %58, %153 : vector<1x128xi32>
    %c128_i32_39 = arith.constant 128 : i32
    %155 = vector.broadcast %c128_i32_39 : i32 to vector<1x128xi32>
    %156 = arith.cmpi slt, %154, %155 : vector<1x128xi32>
    %157 = arith.andi %152, %156 : vector<1x128xi1>
    %cst_40 = arith.constant 0.000000e+00 : f32
    %158 = vector.shape_cast %157 : vector<1x128xi1> to vector<1x128xi1>
    %159 = vector.broadcast %158 : vector<1x128xi1> to vector<4x128xi1>
    %160 = vector.broadcast %cst_40 : f32 to vector<4x128xf32>
    %161 = arith.select %159, %148, %160 : vector<4x128xi1>, vector<4x128xf32>
    %162 = vector.broadcast %57 : vector<4x1xf32> to vector<4x128xf32>
    %163 = arith.mulf %162, %161 : vector<4x128xf32>
    %164 = arith.addf %147, %163 : vector<4x128xf32>
    %165 = vector.extract_strided_slice %164 {offsets = [0, 0], sizes = [2, 128], strides = [1, 1]} : vector<4x128xf32> to vector<2x128xf32>
    %166 = vector.extract_strided_slice %164 {offsets = [2, 0], sizes = [2, 128], strides = [1, 1]} : vector<4x128xf32> to vector<2x128xf32>
    %167 = arith.addf %165, %166 : vector<2x128xf32>
    %168 = arith.negf %167 : vector<2x128xf32>
    %169 = math.exp %168 : vector<2x128xf32>
    %cst_41 = arith.constant 1.000000e+00 : f32
    %170 = vector.broadcast %cst_41 : f32 to vector<2x128xf32>
    %171 = arith.addf %170, %169 : vector<2x128xf32>
    %172 = arith.divf %170, %171 : vector<2x128xf32>
    %173 = vector.shape_cast %172 : vector<2x128xf32> to vector<2x1x128xf32>
    %174 = vector.broadcast %173 : vector<2x1x128xf32> to vector<2x32x128xf32>
    %175 = arith.mulf %17, %174 : vector<2x32x128xf32>
    %c0_42 = arith.constant 0 : index
    %c0_43 = arith.constant 0 : index
    %c0_44 = arith.constant 0 : index
    %176 = vector.load %arg5[%c0_42, %c0_43, %c0_44] : memref<2x32x128xf32, #tpu.memory_space<vmem>>, vector<2x32x128xf32>
    tpu.vector_store %arg5[%c0_42, %c0_43, %c0_44], %175 {strides = array<i32>} : memref<2x32x128xf32, #tpu.memory_space<vmem>>, vector<2x32x128xf32>,
    return
  }
  func.func @transform_0(%arg0: i32) -> (i32, i32, i32) {
    %c0_i32 = arith.constant 0 : i32
    %c0_i32_0 = arith.constant 0 : i32
    %c0_i32_1 = arith.constant 0 : i32
    return %arg0, %c0_i32, %c0_i32_0 : i32, i32, i32
  }
  func.func @transform_1(%arg0: i32) -> (i32, i32) {
    %c0_i32 = arith.constant 0 : i32
    %c0_i32_0 = arith.constant 0 : i32
    %c0_i32_1 = arith.constant 0 : i32
    return %c0_i32, %c0_i32_0 : i32, i32
  }
  func.func @transform_2(%arg0: i32) -> (i32, i32) {
    %c0_i32 = arith.constant 0 : i32
    %c0_i32_0 = arith.constant 0 : i32
    %c0_i32_1 = arith.constant 0 : i32
    return %c0_i32, %c0_i32_0 : i32, i32
  }
  func.func @transform_3(%arg0: i32) -> i32 {
    %c0_i32 = arith.constant 0 : i32
    %c0_i32_0 = arith.constant 0 : i32
    return %c0_i32 : i32
  }
  func.func @transform_4(%arg0: i32) -> (i32, i32, i32) {
    %c0_i32 = arith.constant 0 : i32
    %c0_i32_0 = arith.constant 0 : i32
    %c0_i32_1 = arith.constant 0 : i32
    return %arg0, %c0_i32, %c0_i32_0 : i32, i32, i32
  }
}

</mosaic_0001>

<llo_original>
// kernel: tpu_custom_call.1
$region0: #{tpu_custom_call.1}
  #allocation0 [shape = 'u32[]', space=smem, size = 0x4, offset = 0x4, fixed_abs, tag = 'smem constant byte address 0x4 - core index']
  #allocation1 [shape = 'u32[144,128]{1,0:T(1,128)}', space=vmem, size = 0x12000, scoped, tag = 'internal scratch']
  %s0 = inlined_call_operand.hbm [shape: f32[8,32,128], index: 0, kind: input, shape index: {}]
  %s1 = inlined_call_operand.vmem [shape: f32[32,2], index: 1, kind: input, shape index: {}]
  %s2 = inlined_call_operand.vmem [shape: f32[2,32], index: 2, kind: input, shape index: {}]
  %s3 = inlined_call_operand.vmem [shape: f32[14], index: 3, kind: input, shape index: {}]
  %s4 = inlined_call_operand.hbm [shape: f32[8,32,128], index: 4, kind: output, shape index: {}]
  %s5 = sld [smem:[#allocation0]]
  $region57: #{tpu_custom_call.1} parent=0
    _
  %s7 = ssub.s32 1, %s5
  %s8 = scalar_select 0, %s7, %s5
  $region1: #{tpu_custom_call.1} parent=0
    #allocation2 [shape = 'u8[65536]{0}', space=vmem, size = 0x10000, scoped, tag = 'input window, operand 0']
    #allocation3 [shape = 's32[2]{0}', space=sflag, size = 0x8, scoped, tag = 'scoped memory for tpu_custom_call.1']
    #allocation4 [shape = 's32[2]{0}', space=sflag, size = 0x8, scoped, tag = 'scoped memory for tpu_custom_call.1']
    #allocation5 [shape = 's32[2]{0}', space=sflag, size = 0x8, scoped, tag = 'scoped memory for tpu_custom_call.1']
    #allocation6 [shape = 'u8[512]{0}', space=smem, size = 0x200, scoped, tag = 'input window, operand 3, single buffered']
    #allocation7 [shape = 'u8[65536]{0}', space=vmem, size = 0x10000, scoped, tag = 'output window, operand 0']
    %9 = vsyncpa [#allocation3], 0
    %s10 = scalar_lea.sflag [#allocation3], 1
    %11 = vsyncpa %s10, 0
    %12 = vsyncpa [#allocation5], 0
    %13 = vsyncpa [#allocation4], 0
    %s14 = scalar_lea.sflag [#allocation4], 1
    %15 = vsyncpa %s14, 0
    loop: start=0, step=1, limit=6
    $region2: #{tpu_custom_call.1} parent=1 // loop_pre_header
      _
    $region3: #{tpu_custom_call.1} parent=1 // loop_header
      %s17 = sphi 0, %s21
      %p18 = scmp.ge.s32.totalorder %s17, 6
      %s27 = sphi 0, %s29
      %s30 = sphi 0, %s27
      %s31 = sphi 0, %s30
      %s47 = sphi 0, %s31
      %s51 = sphi 0, %s51
      %s53 = sphi 0, %s51
      %s54 = sphi 0, %s53
      %s68 = sphi 0, %s54
      %s72 = sphi 0, %s72
      %s74 = sphi 0, %s72
      %s75 = sphi 0, %s74
      %s89 = sphi 0, %s75
      %s93 = sphi 0, %s93
      %s95 = sphi 0, %s93
      %s96 = sphi 0, %s95
      %s110 = sphi 0, %s96
      %s116 = sphi 0, %s118
      %s119 = sphi 0, %s116
      %s120 = sphi 0, %s119
      %s136 = sphi 0, %s120
    $region4: #{tpu_custom_call.1} parent=1 // loop_header_branch
      %20 = sbr.rel (%p18) target = $region8
    $region5: #{tpu_custom_call.1} parent=1 // loop_body
      %s22 = ssub.s32 %s17, 1
      %s23 = ssub.s32 %s17, 2
      %s24 = sadd.s32 %s17, 1
      %s25 = ssub.s32 %s17, %s24
      %p26 = scmp.eq.s32.totalorder %s25, 0
      %s28 = sadd.s32 %s27, 1
      %s29 = scalar_select %p26, %s27, %s28
      %p32 = pneg %p26
      %p33 = scmp.eq.s32.totalorder %s17, 3
      %p34 = por %p32, %p33
      %p35 = scmp.ne.s32.totalorder %s27, %s30
      %p36 = scmp.eq.s32.totalorder %s17, 0
      %p37 = por %p35, %p36
      %p38 = scmp.ne.s32.totalorder %s27, %s30
      %p39 = scmp.eq.s32.totalorder %s22, 3
      %p40 = por %p38, %p39
      %p41 = scmp.ne.s32.totalorder %s30, %s31
      %p42 = scmp.eq.s32.totalorder %s22, 0
      %p43 = por %p41, %p42
      %p44 = scmp.ne.s32.totalorder %s30, %s31
      %p45 = scmp.eq.s32.totalorder %s23, 3
      %p46 = por %p44, %p45
      %p48 = scmp.ne.s32.totalorder %s31, %s47
      %p49 = scmp.eq.s32.totalorder %s23, 0
      %p50 = por %p48, %p49
      %s52 = sadd.s32 %s51, 1
      %p55 = scmp.eq.s32.totalorder %s17, 3
      %p56 = scmp.ne.s32.totalorder %s51, %s53
      %p57 = scmp.eq.s32.totalorder %s17, 0
      %p58 = por %p56, %p57
      %p59 = scmp.ne.s32.totalorder %s51, %s53
      %p60 = scmp.eq.s32.totalorder %s22, 3
      %p61 = por %p59, %p60
      %p62 = scmp.ne.s32.totalorder %s53, %s54
      %p63 = scmp.eq.s32.totalorder %s22, 0
      %p64 = por %p62, %p63
      %p65 = scmp.ne.s32.totalorder %s53, %s54
      %p66 = scmp.eq.s32.totalorder %s23, 3
      %p67 = por %p65, %p66
      %p69 = scmp.ne.s32.totalorder %s54, %s68
      %p70 = scmp.eq.s32.totalorder %s23, 0
      %p71 = por %p69, %p70
      %s73 = sadd.s32 %s72, 1
      %p76 = scmp.eq.s32.totalorder %s17, 3
      %p77 = scmp.ne.s32.totalorder %s72, %s74
      %p78 = scmp.eq.s32.totalorder %s17, 0
      %p79 = por %p77, %p78
      %p80 = scmp.ne.s32.totalorder %s72, %s74
      %p81 = scmp.eq.s32.totalorder %s22, 3
      %p82 = por %p80, %p81
      %p83 = scmp.ne.s32.totalorder %s74, %s75
      %p84 = scmp.eq.s32.totalorder %s22, 0
      %p85 = por %p83, %p84
      %p86 = scmp.ne.s32.totalorder %s74, %s75
      %p87 = scmp.eq.s32.totalorder %s23, 3
      %p88 = por %p86, %p87
      %p90 = scmp.ne.s32.totalorder %s75, %s89
      %p91 = scmp.eq.s32.totalorder %s23, 0
      %p92 = por %p90, %p91
      %s94 = sadd.s32 %s93, 1
      %p97 = scmp.eq.s32.totalorder %s17, 3
      %p98 = scmp.ne.s32.totalorder %s93, %s95
      %p99 = scmp.eq.s32.totalorder %s17, 0
      %p100 = por %p98, %p99
      %p101 = scmp.ne.s32.totalorder %s93, %s95
      %p102 = scmp.eq.s32.totalorder %s22, 3
      %p103 = por %p101, %p102
      %p104 = scmp.ne.s32.totalorder %s95, %s96
      %p105 = scmp.eq.s32.totalorder %s22, 0
      %p106 = por %p104, %p105
      %p107 = scmp.ne.s32.totalorder %s95, %s96
      %p108 = scmp.eq.s32.totalorder %s23, 3
      %p109 = por %p107, %p108
      %p111 = scmp.ne.s32.totalorder %s96, %s110
      %p112 = scmp.eq.s32.totalorder %s23, 0
      %p113 = por %p111, %p112
      %s114 = ssub.s32 %s17, %s24
      %p115 = scmp.eq.s32.totalorder %s114, 0
      %s117 = sadd.s32 %s116, 1
      %s118 = scalar_select %p115, %s116, %s117
      %p121 = pneg %p115
      %p122 = scmp.eq.s32.totalorder %s17, 3
      %p123 = por %p121, %p122
      %p124 = scmp.ne.s32.totalorder %s116, %s119
      %p125 = scmp.eq.s32.totalorder %s17, 0
      %p126 = por %p124, %p125
      %p127 = scmp.ne.s32.totalorder %s116, %s119
      %p128 = scmp.eq.s32.totalorder %s22, 3
      %p129 = por %p127, %p128
      %p130 = scmp.ne.s32.totalorder %s119, %s120
      %p131 = scmp.eq.s32.totalorder %s22, 0
      %p132 = por %p130, %p131
      %p133 = scmp.ne.s32.totalorder %s119, %s120
      %p134 = scmp.eq.s32.totalorder %s23, 3
      %p135 = por %p133, %p134
      %p137 = scmp.ne.s32.totalorder %s120, %s136
      %p138 = scmp.eq.s32.totalorder %s23, 0
      %p139 = por %p137, %p138
      %p140 = scmp.le.s32.totalorder 1, %s17
      %p141 = scmp.lt.s32.totalorder %s17, 5
      %p142 = pnand %p140, %p141
      %p143 = pneg %p142
      // Predicated region
      $region9: #{tpu_custom_call.1} parent=5 // pred_check
        _
      $region10: #{tpu_custom_call.1} parent=5 // pred_check_branch
        %145 = sbr.rel (%p142) target = $region12
      $region11: #{tpu_custom_call.1} parent=5 // pred_region
        %s146 = ssub.s32 %s17, 1
        // Predicated region
        $region13: #{tpu_custom_call.1} parent=11 // pred_check
          %p147 = pneg %p64
        $region14: #{tpu_custom_call.1} parent=11 // pred_check_branch
          %149 = sbr.rel (%p147) target = $region16
        $region15: #{tpu_custom_call.1} parent=11 // pred_region
          _
        $region16: #{tpu_custom_call.1} parent=11 // pred_fallthru
          _
        // Predicated region
        $region17: #{tpu_custom_call.1} parent=11 // pred_check
          %p150 = pneg %p85
        $region18: #{tpu_custom_call.1} parent=11 // pred_check_branch
          %152 = sbr.rel (%p150) target = $region20
        $region19: #{tpu_custom_call.1} parent=11 // pred_region
          _
        $region20: #{tpu_custom_call.1} parent=11 // pred_fallthru
          _
        // Predicated region
        $region21: #{tpu_custom_call.1} parent=11 // pred_check
          %p153 = pneg %p106
        $region22: #{tpu_custom_call.1} parent=11 // pred_check_branch
          %155 = sbr.rel (%p153) target = $region24
        $region23: #{tpu_custom_call.1} parent=11 // pred_region
          %s157 = ssub.s32 16, 16
          %158 = vsyncadd [#allocation5], %s157
          %s160 = sshll.u32 %s3, 4
          %s161 = int_to_ptr.vmem [resolvable:$true] %s160
          %163 = dma.vmem_to_smem %s161, 16, [#allocation6], [#allocation5]
        $region24: #{tpu_custom_call.1} parent=11 // pred_fallthru
          _
      $region12: #{tpu_custom_call.1} parent=5 // pred_fallthru
        _
      %p164 = scmp.lt.s32.totalorder %s17, 4
      // Predicated region
      $region25: #{tpu_custom_call.1} parent=5 // pred_check
        %p165 = pneg %p164
      $region26: #{tpu_custom_call.1} parent=5 // pred_check_branch
        %167 = sbr.rel (%p165) target = $region28
      $region27: #{tpu_custom_call.1} parent=5 // pred_region
        // Predicated region
        $region29: #{tpu_custom_call.1} parent=27 // pred_check
          %p168 = pneg %p37
        $region30: #{tpu_custom_call.1} parent=27 // pred_check_branch
          %170 = sbr.rel (%p168) target = $region32
        $region31: #{tpu_custom_call.1} parent=27 // pred_region
          %s171 = sand.u32 %s27, 1
          %s172 = scalar_lea.sflag [#allocation3], %s171
          %s173 = sand.u32 %s27, 1
          %s174 = smul.addr %s173, 64
          %s175 = scalar_lea.vmem [#allocation2], %s174
          %s176 = smul.u32 2, %s17
          %s178 = ssub.s32 1024, 1024
          %179 = vsyncadd %s172, %s178
          %s180 = smul.addr %s176, 4
          %s181 = smul.addr %s180, 128
          %s182 = scalar_lea.hbm %s0, %s181
          %s183 = sshll.u32 %s175, 4
          %s184 = int_to_ptr.vmem [resolvable:$true] %s183
          %189 = dma.hbm_to_vmem [thread:$0]  %s182, 1024, %s184, %s172, 128, 128, 8
        $region32: #{tpu_custom_call.1} parent=27 // pred_fallthru
          _
      $region28: #{tpu_custom_call.1} parent=5 // pred_fallthru
        _
      %p190 = scmp.le.s32.totalorder 1, %s17
      %p191 = scmp.lt.s32.totalorder %s17, 5
      %p192 = pnand %p190, %p191
      %p193 = pneg %p192
      // Predicated region
      $region33: #{tpu_custom_call.1} parent=5 // pred_check
        _
      $region34: #{tpu_custom_call.1} parent=5 // pred_check_branch
        %195 = sbr.rel (%p192) target = $region36
      $region35: #{tpu_custom_call.1} parent=5 // pred_region
        %s196 = ssub.s32 %s17, 1
        %s197 = sand.u32 %s30, 1
        %s198 = scalar_lea.sflag [#allocation3], %s197
        %s199 = sand.u32 %s30, 1
        %s200 = smul.addr %s199, 64
        %s201 = scalar_lea.vmem [#allocation2], %s200
        // Predicated region
        $region37: #{tpu_custom_call.1} parent=35 // pred_check
          %p202 = pneg %p43
        $region38: #{tpu_custom_call.1} parent=35 // pred_check_branch
          %204 = sbr.rel (%p202) target = $region40
        $region39: #{tpu_custom_call.1} parent=35 // pred_region
          %205 = dma.done %s198, 1024
        $region40: #{tpu_custom_call.1} parent=35 // pred_fallthru
          _
        // Predicated region
        $region41: #{tpu_custom_call.1} parent=35 // pred_check
          %p206 = pneg %p106
        $region42: #{tpu_custom_call.1} parent=35 // pred_check_branch
          %208 = sbr.rel (%p206) target = $region44
        $region43: #{tpu_custom_call.1} parent=35 // pred_region
          %209 = dma.done [#allocation5], 16
        $region44: #{tpu_custom_call.1} parent=35 // pred_fallthru
          _
        %210 = sfence
        %s211 = sand.u32 %s30, 1
        %s212 = scalar_lea.sflag [#allocation3], %s211
        %s213 = sand.u32 %s30, 1
        %s214 = smul.addr %s213, 64
        %s215 = scalar_lea.vmem [#allocation2], %s214
        %p216 = pneg %p43
        %p217 = pneg %p40
        %p218 = pneg %p64
        %p219 = pneg %p61
        %p220 = pneg %p85
        %p221 = pneg %p82
        %p222 = pneg %p106
        %p223 = pneg %p103
        %p224 = pneg %p132
        %p225 = pneg %p129
        %s226 = sand.u32 %s119, 1
        %s227 = scalar_lea.sflag [#allocation4], %s226
        %s228 = sand.u32 %s119, 1
        %s229 = smul.addr %s228, 64
        %s230 = scalar_lea.vmem [#allocation7], %s229
        %s231 = smul.u32 2, %s22
        %s232 = smul.u32 2, %s22
        %v233 = vld [vmem:[%s201] sm:$0xff]
        %v234 = vld [vmem:[%s201 + $0x8] sm:$0xff]
        %v235 = vld [vmem:[%s201 + $0x10] sm:$0xff]
        %v236 = vld [vmem:[%s201 + $0x18] sm:$0xff]
        %v237 = vld [vmem:[%s201 + $0x20] sm:$0xff]
        %v238 = vld [vmem:[%s201 + $0x28] sm:$0xff]
        %v239 = vld [vmem:[%s201 + $0x30] sm:$0xff]
        %v240 = vld [vmem:[%s201 + $0x38] sm:$0xff]
        %241 = vadd.xlane.f32.xlu0 %v233
        %v242 = vpop.xlane.xlu0 %241
        %243 = vadd.xlane.f32.xlu0 %v234
        %v244 = vpop.xlane.xlu0 %243
        %245 = vadd.xlane.f32.xlu0 %v235
        %v246 = vpop.xlane.xlu0 %245
        %247 = vadd.xlane.f32.xlu0 %v236
        %v248 = vpop.xlane.xlu0 %247
        %249 = vadd.xlane.f32.xlu0 %v237
        %v250 = vpop.xlane.xlu0 %249
        %251 = vadd.xlane.f32.xlu0 %v238
        %v252 = vpop.xlane.xlu0 %251
        %253 = vadd.xlane.f32.xlu0 %v239
        %v254 = vpop.xlane.xlu0 %253
        %255 = vadd.xlane.f32.xlu0 %v240
        %v256 = vpop.xlane.xlu0 %255
        %v257 = vmul.f32 %v242, 0.0078125
        %v258 = vmul.f32 %v244, 0.0078125
        %v259 = vmul.f32 %v246, 0.0078125
        %v260 = vmul.f32 %v248, 0.0078125
        %v261 = vmul.f32 %v250, 0.0078125
        %v262 = vmul.f32 %v252, 0.0078125
        %v263 = vmul.f32 %v254, 0.0078125
        %v264 = vmul.f32 %v256, 0.0078125
        %v265 = vld [vmem:[%s1] sm:$0xff]
        %v266 = vld [vmem:[%s1 + $0x8] sm:$0xff]
        %v267 = vld [vmem:[%s1 + $0x10] sm:$0xff]
        %v268 = vld [vmem:[%s1 + $0x18] sm:$0xff]
        %v277 = vlaneseq
        %v278 = vand.u32 %v277, 127
        %v279 = vlaneseq
        %v280 = vshrl.u32 %v279, 7
        %v281 = vsub.s32 %v278, %v280
        %v282 = vrot.slane %v257, %v281
        %v283 = vadd.s32 %v278, 4294967288
        %v284 = vlaneseq
        %v285 = vshrl.u32 %v284, 7
        %v286 = vsub.s32 %v283, %v285
        %v287 = vrot.slane %v258, %v286
        %vm288 = vcmask 130112
        %v289 = vsel %vm288, %v287, %v282
        %v290 = vadd.s32 %v278, 4294967280
        %v291 = vlaneseq
        %v292 = vshrl.u32 %v291, 7
        %v293 = vsub.s32 %v290, %v292
        %v294 = vrot.slane %v259, %v293
        %vm295 = vcmask 195712
        %v296 = vsel %vm295, %v294, %v289
        %v297 = vadd.s32 %v278, 4294967272
        %v298 = vlaneseq
        %v299 = vshrl.u32 %v298, 7
        %v300 = vsub.s32 %v297, %v299
        %v301 = vrot.slane %v260, %v300
        %vm302 = vcmask 261312
        %v303 = vsel %vm302, %v301, %v296
        %v304 = vlaneseq
        %v305 = vshrl.u32 %v304, 7
        %v306 = vsub.s32 %v278, %v305
        %v307 = vrot.slane %v261, %v306
        %v308 = vlaneseq
        %v309 = vshrl.u32 %v308, 7
        %v310 = vsub.s32 %v283, %v309
        %v311 = vrot.slane %v262, %v310
        %v312 = vsel %vm288, %v311, %v307
        %v313 = vlaneseq
        %v314 = vshrl.u32 %v313, 7
        %v315 = vsub.s32 %v290, %v314
        %v316 = vrot.slane %v263, %v315
        %v317 = vsel %vm295, %v316, %v312
        %v318 = vlaneseq
        %v319 = vshrl.u32 %v318, 7
        %v320 = vsub.s32 %v297, %v319
        %v321 = vrot.slane %v264, %v320
        %v322 = vsel %vm302, %v321, %v317
        %vm323 = vcmask 1041409
        %v324 = vsel %vm323, %v322, %v303
        %vm325 = vcmask 261120
        %v326 = vsel %vm325, %v324, 0
        %328 = vmatprep.subr.mxu0 0.0
        %329 = vmatpush1.msra.mxu0 0.0
        %330 = vmatprep.subr.mxu0 0.0
        %331 = vmatpush1.msra.mxu0 0.0
        %332 = vmatprep.subr.mxu0 0.0
        %333 = vmatpush1.msra.mxu0 0.0
        %334 = vmatprep.subr.mxu0 0.0
        %335 = vmatpush1.msra.mxu0 0.0
        %336 = vmatprep.subr.mxu0 0.0
        %337 = vmatpush1.msra.mxu0 0.0
        %338 = vmatprep.subr.mxu0 0.0
        %339 = vmatpush1.msra.mxu0 0.0
        %340 = vmatprep.subr.mxu0 0.0
        %341 = vmatpush1.msra.mxu0 0.0
        %342 = vmatprep.subr.mxu0 0.0
        %343 = vmatpush1.msra.mxu0 0.0
        %344 = vmatprep.subr.mxu0 0.0
        %345 = vmatpush1.msra.mxu0 0.0
        %346 = vmatprep.subr.mxu0 0.0
        %347 = vmatpush1.msra.mxu0 0.0
        %348 = vmatprep.subr.mxu0 0.0
        %349 = vmatpush1.msra.mxu0 0.0
        %350 = vmatprep.subr.mxu0 0.0
        %351 = vmatpush1.msra.mxu0 0.0
        %352 = vmatprep.subr.mxu0 0.0
        %353 = vmatpush1.msra.mxu0 %v268
        %354 = vmatprep.subr.mxu0 0.0
        %355 = vmatpush1.msra.mxu0 %v267
        %356 = vmatprep.subr.mxu0 0.0
        %357 = vmatpush1.msra.mxu0 %v266
        %358 = vmatprep.subr.mxu0 0.0
        %359 = vmatpush1.msra.mxu0 %v265
        %360 = vmatprep.subr.mxu0 0.0
        %361 = vmatpush2.msra.mxu0 0.0
        %362 = vmatprep.subr.mxu0 0.0
        %363 = vmatpush2.msra.mxu0 0.0
        %364 = vmatprep.subr.mxu0 0.0
        %365 = vmatpush2.msra.mxu0 0.0
        %366 = vmatprep.subr.mxu0 0.0
        %367 = vmatpush2.msra.mxu0 0.0
        %368 = vmatprep.subr.mxu0 0.0
        %369 = vmatpush2.msra.mxu0 0.0
        %370 = vmatprep.subr.mxu0 0.0
        %371 = vmatpush2.msra.mxu0 0.0
        %372 = vmatprep.subr.mxu0 0.0
        %373 = vmatpush2.msra.mxu0 0.0
        %374 = vmatprep.subr.mxu0 0.0
        %375 = vmatpush2.msra.mxu0 0.0
        %376 = vmatprep.subr.mxu0 0.0
        %377 = vmatpush2.msra.mxu0 0.0
        %378 = vmatprep.subr.mxu0 0.0
        %379 = vmatpush2.msra.mxu0 0.0
        %380 = vmatprep.subr.mxu0 0.0
        %381 = vmatpush2.msra.mxu0 0.0
        %382 = vmatprep.subr.mxu0 0.0
        %383 = vmatpush2.msra.mxu0 0.0
        %384 = vmatprep.subr.mxu0 0.0
        %385 = vmatpush2.msra.mxu0 0.0
        %386 = vmatprep.subr.mxu0 0.0
        %387 = vmatpush2.msra.mxu0 0.0
        %388 = vmatprep.subr.mxu0 0.0
        %389 = vmatpush2.msra.mxu0 0.0
        %390 = vmatprep.subr.mxu0 0.0
        %391 = vmatpush2.msra.mxu0 0.0
        %392 = vmatprep.mubr.f32.mxu0 0.0
        %393 = vmatmul.mubr.f32.gmra.mxu0 %v326
        %v394 = vpop.f32.mrf.mxu0
        %v395 = vadd.f32 0.0, %v394
        %v396 = vpop.f32.mrf.mxu0
        %397 = vdwg.mxu0
        %v398 = vmax.f32 %v395, 0.0
        %v399 = vld [vmem:[%s2] sm:$0x3]
        %vm400 = vcmask 15360
        %v402 = vsel %vm400, %v398, 0
        %vm404 = vcmask 1041408
        %v406 = vsel %vm404, %v399, 0
        %408 = vmatprep.subr.mxu0 0.0
        %409 = vmatpush1.msra.mxu0 0.0
        %410 = vmatprep.subr.mxu0 0.0
        %411 = vmatpush1.msra.mxu0 0.0
        %412 = vmatprep.subr.mxu0 0.0
        %413 = vmatpush1.msra.mxu0 0.0
        %414 = vmatprep.subr.mxu0 0.0
        %415 = vmatpush1.msra.mxu0 0.0
        %416 = vmatprep.subr.mxu0 0.0
        %417 = vmatpush1.msra.mxu0 0.0
        %418 = vmatprep.subr.mxu0 0.0
        %419 = vmatpush1.msra.mxu0 0.0
        %420 = vmatprep.subr.mxu0 0.0
        %421 = vmatpush1.msra.mxu0 0.0
        %422 = vmatprep.subr.mxu0 0.0
        %423 = vmatpush1.msra.mxu0 0.0
        %424 = vmatprep.subr.mxu0 0.0
        %425 = vmatpush1.msra.mxu0 0.0
        %426 = vmatprep.subr.mxu0 0.0
        %427 = vmatpush1.msra.mxu0 0.0
        %428 = vmatprep.subr.mxu0 0.0
        %429 = vmatpush1.msra.mxu0 0.0
        %430 = vmatprep.subr.mxu0 0.0
        %431 = vmatpush1.msra.mxu0 0.0
        %432 = vmatprep.subr.mxu0 0.0
        %433 = vmatpush1.msra.mxu0 0.0
        %434 = vmatprep.subr.mxu0 0.0
        %435 = vmatpush1.msra.mxu0 0.0
        %436 = vmatprep.subr.mxu0 0.0
        %437 = vmatpush1.msra.mxu0 0.0
        %438 = vmatprep.subr.mxu0 0.0
        %439 = vmatpush1.msra.mxu0 %v406
        %440 = vmatprep.subr.mxu0 0.0
        %441 = vmatpush2.msra.mxu0 0.0
        %442 = vmatprep.subr.mxu0 0.0
        %443 = vmatpush2.msra.mxu0 0.0
        %444 = vmatprep.subr.mxu0 0.0
        %445 = vmatpush2.msra.mxu0 0.0
        %446 = vmatprep.subr.mxu0 0.0
        %447 = vmatpush2.msra.mxu0 0.0
        %448 = vmatprep.subr.mxu0 0.0
        %449 = vmatpush2.msra.mxu0 0.0
        %450 = vmatprep.subr.mxu0 0.0
        %451 = vmatpush2.msra.mxu0 0.0
        %452 = vmatprep.subr.mxu0 0.0
        %453 = vmatpush2.msra.mxu0 0.0
        %454 = vmatprep.subr.mxu0 0.0
        %455 = vmatpush2.msra.mxu0 0.0
        %456 = vmatprep.subr.mxu0 0.0
        %457 = vmatpush2.msra.mxu0 0.0
        %458 = vmatprep.subr.mxu0 0.0
        %459 = vmatpush2.msra.mxu0 0.0
        %460 = vmatprep.subr.mxu0 0.0
        %461 = vmatpush2.msra.mxu0 0.0
        %462 = vmatprep.subr.mxu0 0.0
        %463 = vmatpush2.msra.mxu0 0.0
        %464 = vmatprep.subr.mxu0 0.0
        %465 = vmatpush2.msra.mxu0 0.0
        %466 = vmatprep.subr.mxu0 0.0
        %467 = vmatpush2.msra.mxu0 0.0
        %468 = vmatprep.subr.mxu0 0.0
        %469 = vmatpush2.msra.mxu0 0.0
        %470 = vmatprep.subr.mxu0 0.0
        %471 = vmatpush2.msra.mxu0 0.0
        %472 = vmatprep.mubr.f32.mxu0 0.0
        %473 = vmatmul.mubr.f32.gmra.mxu0 %v402
        %v474 = vpop.f32.mrf.mxu0
        %v475 = vadd.f32 0.0, %v474
        %v476 = vpop.f32.mrf.mxu0
        %477 = vdwg.mxu0
        %v478 = vxor.u32 %v475, 2147483648
        %v479 = vmul.f32 %v478, 1.442695
        %v480 = vpow.pop %v479
        %v481 = vadd.f32 %v480, 1.0
        %v482 = vrcp.pop %v481
        %v483 = vmul.f32 1.0, %v482
        %v484 = vlaneseq
        %v485 = vshrl.u32 %v484, 7
        %v486 = vsub.s32 0, %v485
        %v487 = vrot.slane %v483, %v486
        %489 = vbcast.lane.b32.xlu0 %v487, 256
        %v490 = vpop.permute.xlu0 %489
        %s492 = sor.u32 256, 8
        %493 = vbcast.lane.b32.xlu0 %v487, %s492
        %v494 = vpop.permute.xlu0 %493
        %s496 = sor.u32 256, 16
        %497 = vbcast.lane.b32.xlu0 %v487, %s496
        %v498 = vpop.permute.xlu0 %497
        %s500 = sor.u32 256, 24
        %501 = vbcast.lane.b32.xlu0 %v487, %s500
        %v502 = vpop.permute.xlu0 %501
        %v503 = vlaneseq
        %v504 = vshrl.u32 %v503, 7
        %v505 = vsub.s32 1, %v504
        %v506 = vrot.slane %v483, %v505
        %508 = vbcast.lane.b32.xlu0 %v506, 256
        %v509 = vpop.permute.xlu0 %508
        %s511 = sor.u32 256, 8
        %512 = vbcast.lane.b32.xlu0 %v506, %s511
        %v513 = vpop.permute.xlu0 %512
        %s515 = sor.u32 256, 16
        %516 = vbcast.lane.b32.xlu0 %v506, %s515
        %v517 = vpop.permute.xlu0 %516
        %s519 = sor.u32 256, 24
        %520 = vbcast.lane.b32.xlu0 %v506, %s519
        %v521 = vpop.permute.xlu0 %520
        %v522 = vmul.f32 %v233, %v490
        %v523 = vmul.f32 %v234, %v494
        %v524 = vmul.f32 %v235, %v498
        %v525 = vmul.f32 %v236, %v502
        %v526 = vmul.f32 %v237, %v509
        %v527 = vmul.f32 %v238, %v513
        %v528 = vmul.f32 %v239, %v517
        %v529 = vmul.f32 %v240, %v521
        %v530 = vadd.f32 %v522, %v523
        %v531 = vadd.f32 %v530, %v524
        %v532 = vadd.f32 %v531, %v525
        %v533 = vrot.slane %v532, 4
        %v534 = vadd.f32 %v532, %v533
        %v535 = vrot.slane %v534, 2
        %v536 = vadd.f32 %v534, %v535
        %v537 = vrot.slane %v536, 1
        %v538 = vadd.f32 %v536, %v537
        %v539 = vadd.f32 %v526, %v527
        %v540 = vadd.f32 %v539, %v528
        %v541 = vadd.f32 %v540, %v529
        %v542 = vrot.slane %v541, 4
        %v543 = vadd.f32 %v541, %v542
        %v544 = vrot.slane %v543, 2
        %v545 = vadd.f32 %v543, %v544
        %v546 = vrot.slane %v545, 1
        %v547 = vadd.f32 %v545, %v546
        %v548 = vmul.f32 %v538, 0.03125
        %v549 = vmul.f32 %v547, 0.03125
        %v550 = vmax.f32 %v522, %v524
        %v551 = vmax.f32 %v523, %v525
        %v552 = vmax.f32 %v550, %v551
        %v553 = vrot.slane %v552, 4
        %v554 = vmax.f32 %v552, %v553
        %v555 = vrot.slane %v554, 2
        %v556 = vmax.f32 %v554, %v555
        %v557 = vrot.slane %v556, 1
        %v558 = vmax.f32 %v556, %v557
        %v559 = vmax.f32 %v526, %v528
        %v560 = vmax.f32 %v527, %v529
        %v561 = vmax.f32 %v559, %v560
        %v562 = vrot.slane %v561, 4
        %v563 = vmax.f32 %v561, %v562
        %v564 = vrot.slane %v563, 2
        %v565 = vmax.f32 %v563, %v564
        %v566 = vrot.slane %v565, 1
        %v567 = vmax.f32 %v565, %v566
        %v570 = vsel %vm323, %v549, %v548
        %vm574 = vcmask 1043459
        %v575 = vsel %vm574, %v567, %v558
        %v577 = vsel %vm404, %v570, %v575
        %s578 = sld [smem:[#allocation6]]
        %v579 = vstv %s578
        %s580 = sld [smem:[#allocation6 + $0x7]]
        %v581 = vstv %s580
        %v582 = vsel %vm404, %v579, %v581
        %s583 = sld [smem:[#allocation6 + $0x1]]
        %v584 = vstv %s583
        %s585 = sld [smem:[#allocation6 + $0x8]]
        %v586 = vstv %s585
        %v587 = vsel %vm404, %v584, %v586
        %s588 = sld [smem:[#allocation6 + $0x2]]
        %v589 = vstv %s588
        %s590 = sld [smem:[#allocation6 + $0x9]]
        %v591 = vstv %s590
        %v592 = vsel %vm404, %v589, %v591
        %s593 = sld [smem:[#allocation6 + $0x3]]
        %v594 = vstv %s593
        %s595 = sld [smem:[#allocation6 + $0xa]]
        %v596 = vstv %s595
        %v597 = vsel %vm404, %v594, %v596
        %s598 = sld [smem:[#allocation6 + $0x4]]
        %v599 = vstv %s598
        %s600 = sld [smem:[#allocation6 + $0xb]]
        %v601 = vstv %s600
        %v602 = vsel %vm404, %v599, %v601
        %s603 = sld [smem:[#allocation6 + $0x5]]
        %v604 = vstv %s603
        %s605 = sld [smem:[#allocation6 + $0xc]]
        %v606 = vstv %s605
        %v607 = vsel %vm404, %v604, %v606
        %s608 = sld [smem:[#allocation6 + $0x6]]
        %v609 = vstv %s608
        %s610 = sld [smem:[#allocation6 + $0xd]]
        %v611 = vstv %s610
        %v612 = vsel %vm404, %v609, %v611
        %613 = vrot.lane.b32.xlu0 %v577, 3
        %v614 = vpop.permute.xlu0 %613
        %v615 = vadd.s32 %v278, 4294967293
        %vm616 = vcmp.ge.s32.totalorder %v615, 0
        %vm617 = vcmp.lt.s32.totalorder %v615, 128
        %vm618 = vmand %vm616, %vm617
        %v619 = vsel %vm618, 1, 0
        %vm620 = vcmp.eq.s32.totalorder %v619, 1
        %v621 = vsel %vm620, %v614, 0.0
        %623 = vset.pattern.permute.xlu0 0
        %624 = vperm.xlu0 %623, %v582
        %v625 = vpop.permute.xlu0 %624
        %v627 = vmul.f32 %v625, %v621
        %v628 = vadd.f32 %v627, 0.0
        %629 = vrot.lane.b32.xlu0 %v577, 2
        %v630 = vpop.permute.xlu0 %629
        %v631 = vadd.s32 %v278, 4294967294
        %vm632 = vcmp.ge.s32.totalorder %v631, 0
        %vm633 = vcmp.lt.s32.totalorder %v631, 128
        %vm634 = vmand %vm632, %vm633
        %v635 = vsel %vm634, 1, 0
        %vm636 = vcmp.eq.s32.totalorder %v635, 1
        %v637 = vsel %vm636, %v630, 0.0
        %639 = vset.pattern.permute.xlu0 0
        %640 = vperm.xlu0 %639, %v587
        %v641 = vpop.permute.xlu0 %640
        %v643 = vmul.f32 %v641, %v637
        %v644 = vadd.f32 %v628, %v643
        %645 = vrot.lane.b32.xlu0 %v577, 1
        %v646 = vpop.permute.xlu0 %645
        %v647 = vadd.s32 %v278, 4294967295
        %vm648 = vcmp.ge.s32.totalorder %v647, 0
        %vm649 = vcmp.lt.s32.totalorder %v647, 128
        %vm650 = vmand %vm648, %vm649
        %v651 = vsel %vm650, 1, 0
        %vm652 = vcmp.eq.s32.totalorder %v651, 1
        %v653 = vsel %vm652, %v646, 0.0
        %655 = vset.pattern.permute.xlu0 0
        %656 = vperm.xlu0 %655, %v592
        %v657 = vpop.permute.xlu0 %656
        %v659 = vmul.f32 %v657, %v653
        %v660 = vadd.f32 %v644, %v659
        %662 = vset.pattern.permute.xlu0 0
        %663 = vperm.xlu0 %662, %v597
        %v664 = vpop.permute.xlu0 %663
        %v666 = vmul.f32 %v664, %v577
        %v667 = vadd.f32 %v660, %v666
        %668 = vrot.lane.b32.xlu0 %v577, 127
        %v669 = vpop.permute.xlu0 %668
        %v670 = vadd.s32 %v278, 1
        %vm671 = vcmp.ge.s32.totalorder %v670, 0
        %vm672 = vcmp.lt.s32.totalorder %v670, 128
        %vm673 = vmand %vm671, %vm672
        %v674 = vsel %vm673, 1, 0
        %vm675 = vcmp.eq.s32.totalorder %v674, 1
        %v676 = vsel %vm675, %v669, 0.0
        %678 = vset.pattern.permute.xlu0 0
        %679 = vperm.xlu0 %678, %v602
        %v680 = vpop.permute.xlu0 %679
        %v682 = vmul.f32 %v680, %v676
        %v683 = vadd.f32 %v667, %v682
        %684 = vrot.lane.b32.xlu0 %v577, 126
        %v685 = vpop.permute.xlu0 %684
        %v686 = vadd.s32 %v278, 2
        %vm687 = vcmp.ge.s32.totalorder %v686, 0
        %vm688 = vcmp.lt.s32.totalorder %v686, 128
        %vm689 = vmand %vm687, %vm688
        %v690 = vsel %vm689, 1, 0
        %vm691 = vcmp.eq.s32.totalorder %v690, 1
        %v692 = vsel %vm691, %v685, 0.0
        %694 = vset.pattern.permute.xlu0 0
        %695 = vperm.xlu0 %694, %v607
        %v696 = vpop.permute.xlu0 %695
        %v698 = vmul.f32 %v696, %v692
        %v699 = vadd.f32 %v683, %v698
        %700 = vrot.lane.b32.xlu0 %v577, 125
        %v701 = vpop.permute.xlu0 %700
        %v702 = vadd.s32 %v278, 3
        %vm703 = vcmp.ge.s32.totalorder %v702, 0
        %vm704 = vcmp.lt.s32.totalorder %v702, 128
        %vm705 = vmand %vm703, %vm704
        %v706 = vsel %vm705, 1, 0
        %vm707 = vcmp.eq.s32.totalorder %v706, 1
        %v708 = vsel %vm707, %v701, 0.0
        %710 = vset.pattern.permute.xlu0 0
        %711 = vperm.xlu0 %710, %v612
        %v712 = vpop.permute.xlu0 %711
        %v714 = vmul.f32 %v712, %v708
        %v715 = vadd.f32 %v699, %v714
        %v717 = vrot.slane %v715, 2
        %v719 = vadd.f32 %v715, %v717
        %v720 = vxor.u32 %v719, 2147483648
        %v721 = vmul.f32 %v720, 1.442695
        %v722 = vpow.pop %v721
        %v723 = vadd.f32 %v722, 1.0
        %v724 = vrcp.pop %v723
        %v725 = vmul.f32 1.0, %v724
        %v728 = vunpack.c.l.s4 1966171168
        %v729 = vunpack.c.0.s8 %v728
        %v730 = vlaneseq
        %v731 = vshrl.u32 %v730, 7
        %v732 = vsub.s32 %v729, %v731
        %v733 = vrot.slane %v725, %v732
        %v734 = vcombine.high %v733, %v733
        %v736 = vunpack.c.l.s4 1966171168
        %v737 = vunpack.c.0.s8 %v736
        %v738 = vlaneseq
        %v739 = vshrl.u32 %v738, 7
        %v740 = vsub.s32 %v737, %v739
        %v741 = vrot.slane %v733, %v740
        %v743 = vunpack.c.l.s4 1966171168
        %v744 = vunpack.c.0.s8 %v743
        %v745 = vlaneseq
        %v746 = vshrl.u32 %v745, 7
        %v747 = vsub.s32 %v744, %v746
        %v748 = vrot.slane %v734, %v747
        %v749 = vlaneseq
        %v750 = vshrl.u32 %v749, 7
        %v751 = vsub.s32 0, %v750
        %v752 = vrot.slane %v741, %v751
        %v753 = vlaneseq
        %v754 = vshrl.u32 %v753, 7
        %v755 = vsub.s32 0, %v754
        %v756 = vrot.slane %v748, %v755
        %v759 = vmul.f32 %v522, %v752
        %v760 = vmul.f32 %v523, %v752
        %v761 = vmul.f32 %v524, %v752
        %v762 = vmul.f32 %v525, %v752
        %v763 = vmul.f32 %v526, %v756
        %v764 = vmul.f32 %v527, %v756
        %v765 = vmul.f32 %v528, %v756
        %v766 = vmul.f32 %v529, %v756
        %767 = vst [vmem:[%s230] sm:$0xff] %v759
        %768 = vst [vmem:[%s230 + $0x8] sm:$0xff] %v760
        %769 = vst [vmem:[%s230 + $0x10] sm:$0xff] %v761
        %770 = vst [vmem:[%s230 + $0x18] sm:$0xff] %v762
        %771 = vst [vmem:[%s230 + $0x20] sm:$0xff] %v763
        %772 = vst [vmem:[%s230 + $0x28] sm:$0xff] %v764
        %773 = vst [vmem:[%s230 + $0x30] sm:$0xff] %v765
        %774 = vst [vmem:[%s230 + $0x38] sm:$0xff] %v766
        %s775 = sand.u32 %s119, 1
        %s776 = scalar_lea.sflag [#allocation4], %s775
        %s777 = sand.u32 %s119, 1
        %s778 = smul.addr %s777, 64
        %s779 = scalar_lea.vmem [#allocation7], %s778
        // Predicated region
        $region45: #{tpu_custom_call.1} parent=35 // pred_check
          %p780 = pneg %p129
        $region46: #{tpu_custom_call.1} parent=35 // pred_check_branch
          %782 = sbr.rel (%p780) target = $region48
        $region47: #{tpu_custom_call.1} parent=35 // pred_region
          %s783 = smul.u32 2, %s22
          %s785 = ssub.s32 1024, 1024
          %786 = vsyncadd %s776, %s785
          %s787 = smul.addr %s783, 4
          %s788 = smul.addr %s787, 128
          %s789 = scalar_lea.hbm %s4, %s788
          %s790 = sshll.u32 %s779, 4
          %s791 = int_to_ptr.vmem [resolvable:$true] %s790
          %796 = dma.vmem_to_hbm [thread:$0]  %s791, 1024, %s789, %s776, 128, 128, 8
        $region48: #{tpu_custom_call.1} parent=35 // pred_fallthru
          _
      $region36: #{tpu_custom_call.1} parent=5 // pred_fallthru
        _
      %p797 = scmp.le.s32.totalorder 2, %s17
      // Predicated region
      $region49: #{tpu_custom_call.1} parent=5 // pred_check
        %p798 = pneg %p797
      $region50: #{tpu_custom_call.1} parent=5 // pred_check_branch
        %800 = sbr.rel (%p798) target = $region52
      $region51: #{tpu_custom_call.1} parent=5 // pred_region
        %s801 = ssub.s32 %s17, 2
        // Predicated region
        $region53: #{tpu_custom_call.1} parent=51 // pred_check
          %p802 = pneg %p135
        $region54: #{tpu_custom_call.1} parent=51 // pred_check_branch
          %804 = sbr.rel (%p802) target = $region56
        $region55: #{tpu_custom_call.1} parent=51 // pred_region
          %s805 = sand.u32 %s120, 1
          %s806 = scalar_lea.sflag [#allocation4], %s805
          %s807 = sand.u32 %s120, 1
          %s808 = smul.addr %s807, 64
          %s809 = scalar_lea.vmem [#allocation7], %s808
          %810 = dma.done %s806, 1024
        $region56: #{tpu_custom_call.1} parent=51 // pred_fallthru
          _
      $region52: #{tpu_custom_call.1} parent=5 // pred_fallthru
        _
    $region6: #{tpu_custom_call.1} parent=1 // loop_footer
      %s21 = sadd.s32 1, %s17
    $region7: #{tpu_custom_call.1} parent=1 // loop_footer_branch
      %16 = sbr.rel target = $region3
    $region8: #{tpu_custom_call.1} parent=1 // loop_exit
      _
    %811 = vsyncpa [#allocation3], 1
    %s812 = scalar_lea.sflag [#allocation3], 1
    %813 = vsyncpa %s812, 1
    %814 = vsyncpa [#allocation4], 1
    %s815 = scalar_lea.sflag [#allocation4], 1
    %816 = vsyncpa %s815, 1
    %817 = vsyncpa [#allocation5], 1
    %s818 = scalar_lea.sflag [#allocation5], 1
    %819 = vsyncpa %s818, 1

</llo_original>
